<compile_context>
chip_gen: v7x
topology: tpu7x:2x2x1
jax: 0.10.0
libtpu: 0.0.40
codegen_flags: <defaults>
</compile_context>

<pallas_src>
import functools

import jax
import jax.numpy as jnp
from jax import lax
from jax.experimental import pallas as pl
from jax.experimental.pallas import tpu as pltpu


def _cdiv(a, b):
    return -(-a // b)


def _round_up(x, m):
    return ((x + m - 1) // m) * m


def _vmem_capacity_bytes():
    try:
        return int(pltpu.get_tpu_info().vmem_capacity_bytes)
    except Exception:
        return 64 * 1024 * 1024  # conservative (v7x-sized) fallback


def _ccc_from_moments(sp, st, spp, stt, spt, a, b, n):
    """CCC from per-row *shifted* raw moments.

    sp/st/spp/stt/spt are sums over the last dim (length n) of (p-a), (t-b),
    (p-a)^2, (t-b)^2, (p-a)(t-b); a/b are the per-row shifts (first sample).
    Variance/covariance are shift-invariant; means get the shift added back.
    """
    inv_n = 1.0 / n                 # trace-time python floats -> pure multiplies
    inv_nm1 = 1.0 / (n - 1.0)
    mu_ps = sp * inv_n              # mean of shifted pred
    mu_ts = st * inv_n              # mean of shifted target
    var_p = (spp - sp * mu_ps) * inv_nm1     # torch.var default: unbiased (N-1)
    var_t = (stt - st * mu_ts) * inv_nm1
    cov = (spt - sp * mu_ts) * inv_n         # reference cov uses .mean(): N divisor
    d = (a - b) + (mu_ps - mu_ts)            # mu_pred - mu_target
    denom = var_p + var_t + d * d
    return (2.0 * cov) * pl.reciprocal(denom, approx=False)


def _ccc_kernel_single(pred_ref, target_ref, out_ref, *, n_true):
    """Single T block: grid = (row_blocks,). Everything computed in one shot."""
    p = pred_ref[...].astype(jnp.float32)     # (RB, T)
    t = target_ref[...].astype(jnp.float32)
    a = p[:, 0:1]                             # per-row shift: first sample
    b = t[:, 0:1]
    dp = p - a
    dt = t - b
    sp = jnp.sum(dp, axis=-1, keepdims=True)
    st = jnp.sum(dt, axis=-1, keepdims=True)
    spp = jnp.sum(dp * dp, axis=-1, keepdims=True)
    stt = jnp.sum(dt * dt, axis=-1, keepdims=True)
    spt = jnp.sum(dp * dt, axis=-1, keepdims=True)
    ccc = _ccc_from_moments(sp, st, spp, stt, spt, a, b, n_true)   # (RB, 1)
    # Lane-dense store: (RB,1) column -> (1,RB) row so the output write is a
    # full-lane unmasked store and the writeback DMA is contiguous.
    out_ref[...] = jnp.transpose(ccc).reshape(out_ref.shape).astype(out_ref.dtype)


def _ccc_kernel_multi(pred_ref, target_ref, out_ref,
                      sp_ref, st_ref, spp_ref, stt_ref, spt_ref,
                      a_ref, b_ref, *, n_true, t_block, t_rem):
    """Long T: grid = (row_blocks, t_blocks); the T (reduction) axis is last."""
    j = pl.program_id(1)
    last = pl.num_programs(1) - 1

    @pl.when(j == 0)
    def _init():
        a_ref[...] = pred_ref[:, 0:1].astype(jnp.float32)
        b_ref[...] = target_ref[:, 0:1].astype(jnp.float32)
        sp_ref[...] = jnp.zeros_like(sp_ref)
        st_ref[...] = jnp.zeros_like(st_ref)
        spp_ref[...] = jnp.zeros_like(spp_ref)
        stt_ref[...] = jnp.zeros_like(stt_ref)
        spt_ref[...] = jnp.zeros_like(spt_ref)

    a = a_ref[...]                            # (RB, 1)
    b = b_ref[...]

    def _accumulate(n_full_chunks, tail_valid):
        # Lane-parallel partial accumulation: 128-lane chunks are read straight
        # from the refs (no full-tile f32 temporaries) and added into (RB, 128)
        # accumulators with pure VPU ops; the single cross-lane (XLU) reduction
        # happens once, in the finalize block.
        sp = sp_ref[...]
        st = st_ref[...]
        spp = spp_ref[...]
        stt = stt_ref[...]
        spt = spt_ref[...]

        def _step(pc, tc, sp, st, spp, stt, spt):
            return (sp + pc, st + tc, spp + pc * pc, stt + tc * tc, spt + pc * tc)

        for c in range(n_full_chunks):
            sl = slice(c * 128, (c + 1) * 128)
            pc = pred_ref[:, sl].astype(jnp.float32) - a
            tc = target_ref[:, sl].astype(jnp.float32) - b
            sp, st, spp, stt, spt = _step(pc, tc, sp, st, spp, stt, spt)
        if tail_valid:
            c = n_full_chunks
            sl = slice(c * 128, (c + 1) * 128)
            pc = pred_ref[:, sl].astype(jnp.float32) - a
            tc = target_ref[:, sl].astype(jnp.float32) - b
            lane = lax.broadcasted_iota(jnp.int32, pc.shape, 1)
            valid = lane < tail_valid
            pc = jnp.where(valid, pc, 0.0)
            tc = jnp.where(valid, tc, 0.0)
            sp, st, spp, stt, spt = _step(pc, tc, sp, st, spp, stt, spt)

        sp_ref[...] = sp
        st_ref[...] = st
        spp_ref[...] = spp
        stt_ref[...] = stt
        spt_ref[...] = spt

    full_chunks = t_block // 128
    if t_rem == 0:
        _accumulate(full_chunks, 0)
    else:
        # Only the last T block is ragged: keep the hot path completely
        # mask-free and statically skip fully-OOB chunks in the final block.
        @pl.when(j != last)
        def _full_block():
            _accumulate(full_chunks, 0)

        @pl.when(j == last)
        def _ragged_block():
            _accumulate(t_rem // 128, t_rem % 128)

    @pl.when(j == last)
    def _finalize():
        sp = jnp.sum(sp_ref[...], axis=-1, keepdims=True)
        st = jnp.sum(st_ref[...], axis=-1, keepdims=True)
        spp = jnp.sum(spp_ref[...], axis=-1, keepdims=True)
        stt = jnp.sum(stt_ref[...], axis=-1, keepdims=True)
        spt = jnp.sum(spt_ref[...], axis=-1, keepdims=True)
        ccc = _ccc_from_moments(sp, st, spp, stt, spt, a, b, n_true)   # (RB, 1)
        out_ref[...] = jnp.transpose(ccc).reshape(out_ref.shape).astype(out_ref.dtype)


def ccc_pallas(pred, target, *, row_block=None, t_block=None, interpret=False):
    """Concordance correlation coefficient along the last dim (Pallas TPU)."""
    assert pred.shape == target.shape, "pred/target shape mismatch"
    assert pred.ndim >= 1
    lead = pred.shape[:-1]
    T = int(pred.shape[-1])
    assert T >= 2, "unbiased variance needs at least 2 samples along the last dim"
    B = 1
    for d in lead:
        B *= int(d)
    B = max(B, 1)
    out_dtype = pred.dtype
    elem_bytes = jnp.dtype(pred.dtype).itemsize

    pred2 = pred.reshape(B, T)
    target2 = target.reshape(B, T)

    # ---- generation-aware budgets (v5e/v6e: 128 MiB VMEM, v7x: 64 MiB) ----
    vmem_cap = _vmem_capacity_bytes()
    big_vmem = vmem_cap >= 96 * (1 << 20)
    tile_target = (6 << 20) if big_vmem else (4 << 20)      # bytes per input tile
    vmem_ceiling = max(32 << 20, (vmem_cap * 3) // 4)

    # ---- T tiling: one full-width block when possible, else >=1024-col tiles ----
    SINGLE_T_LIMIT = 8192
    if t_block is None:
        t_block = T if T <= SINGLE_T_LIMIT else 2048
    t_block = int(t_block)
    if t_block >= T:
        t_block = T
    else:
        t_block = max(1024, (t_block // 128) * 128)          # never tiny column tiles
        if t_block >= T:
            t_block = T
    single = t_block == T
    num_t_blocks = 1 if single else _cdiv(T, t_block)
    t_rem = 0 if single else T % t_block

    # ---- row tiling: big tiles, 128-multiples when possible, no host padding ----
    if row_block is None:
        rb = max(8, tile_target // max(1, t_block * elem_bytes))
        rb = min(rb, 2048)
        if rb >= 128 and B >= 128:
            rb = (rb // 128) * 128
        else:
            rb = max(8, (rb // 8) * 8)
        if rb >= B:
            if B >= 16:
                # Split into >=2 row blocks so the "parallel" axis feeds both
                # TensorCores on v7x-class parts (harmless on v5e/v6e).
                half = _cdiv(B, 2)
                rb = _round_up(half, 128) if B >= 256 else _round_up(half, 8)
                if rb >= B:
                    rb = B
            else:
                rb = B          # full-dim row block (allowed even when B < 8)
    else:
        rb = int(row_block)
        rb = max(1, min(rb, B))
        if rb < B:
            rb = max(8, (rb // 8) * 8)

    def _est_vmem(rb_):
        tile_in = rb_ * t_block * elem_bytes
        if single:
            # 2 inputs x 2 pipeline buffers + ~3 full-tile f32 intermediates
            return 4 * tile_in + 3 * rb_ * t_block * 4 + (2 << 20)
        # 2 inputs x 2 buffers + (RB,128) accumulators/chunks + slack
        return 4 * tile_in + 20 * 1024 * rb_ + (2 << 20)

    while rb > 8 and _est_vmem(rb) > vmem_ceiling:
        new_rb = max(8, ((rb // 2) // 8) * 8)
        if new_rb == rb:
            break
        rb = new_rb

    row_block = rb
    num_row_blocks = _cdiv(B, row_block)
    vmem_limit = int(min(vmem_ceiling, max(32 << 20, int(_est_vmem(row_block) * 1.25))))

    out_shape = jax.ShapeDtypeStruct((num_row_blocks, 1, row_block), jnp.float32)

    if single:
        kernel = functools.partial(_ccc_kernel_single, n_true=float(T))
        grid = (num_row_blocks,)
        in_specs = [pl.BlockSpec((row_block, t_block), lambda i: (i, 0)),
                    pl.BlockSpec((row_block, t_block), lambda i: (i, 0))]
        out_specs = pl.BlockSpec((1, 1, row_block), lambda i: (i, 0, 0))
        scratch_shapes = []
        dims = ("parallel",)
    else:
        kernel = functools.partial(_ccc_kernel_multi, n_true=float(T),
                                   t_block=t_block, t_rem=t_rem)
        grid = (num_row_blocks, num_t_blocks)
        in_specs = [pl.BlockSpec((row_block, t_block), lambda i, j: (i, j)),
                    pl.BlockSpec((row_block, t_block), lambda i, j: (i, j))]
        out_specs = pl.BlockSpec((1, 1, row_block), lambda i, j: (i, 0, 0))
        scratch_shapes = ([pltpu.VMEM((row_block, 128), jnp.float32)] * 5
                          + [pltpu.VMEM((row_block, 1), jnp.float32)] * 2)
        dims = ("parallel", "arbitrary")

    out = pl.pallas_call(
        kernel,
        out_shape=out_shape,
        grid_spec=pltpu.PrefetchScalarGridSpec(
            num_scalar_prefetch=0,
            grid=grid,
            in_specs=in_specs,
            out_specs=out_specs,
            scratch_shapes=scratch_shapes),
        compiler_params=pltpu.CompilerParams(
            dimension_semantics=dims,
            vmem_limit_bytes=vmem_limit),
        interpret=interpret,
    )(pred2, target2)

    ccc = out.reshape(-1)[:B].astype(out_dtype)
    ccc = ccc.reshape(lead) if lead else ccc.reshape(())
    # reference returns ccc.squeeze(): (B,) for B > 1, scalar for B == 1
    return jnp.squeeze(ccc)


def _ccc_ref(pred, target):
    pred = pred.astype(jnp.float32)
    target = target.astype(jnp.float32)
    n = pred.shape[-1]
    mu_p = jnp.mean(pred, axis=-1, keepdims=True)
    mu_t = jnp.mean(target, axis=-1, keepdims=True)
    var_p = jnp.sum((pred - mu_p) ** 2, axis=-1, keepdims=True) / (n - 1)
    var_t = jnp.sum((target - mu_t) ** 2, axis=-1, keepdims=True) / (n - 1)
    cov = jnp.mean((pred - mu_p) * (target - mu_t), axis=-1, keepdims=True)
    ccc = 2 * cov / (var_p + var_t + (mu_p - mu_t) ** 2)
    return jnp.squeeze(ccc)


if __name__ == "__main__":
    base_key = jax.random.PRNGKey(0)

    def _run_case(idx, B, T, offset=0.0, atol=2e-5, rtol=1e-3, **kw):
        k1, k2 = jax.random.split(jax.random.fold_in(base_key, idx))
        base = jax.random.normal(k1, (B, T), dtype=jnp.float32)
        noise = jax.random.normal(k2, (B, T), dtype=jnp.float32)
        pred = offset + base
        target = offset + 0.7 * base + 0.3 * noise + 0.1
        out = jax.block_until_ready(ccc_pallas(pred, target, **kw))
        ref = jax.block_until_ready(_ccc_ref(pred, target))
        assert out.shape == ref.shape, (idx, out.shape, ref.shape)
        max_err = float(jnp.max(jnp.abs(out - ref)))
        assert jnp.allclose(out, ref, atol=atol, rtol=rtol), (
            f"case {idx} (B={B}, T={T}) mismatch, max abs err {max_err}")

    # 1) tiny: single row block, single T block
    _run_case(0, 8, 128)
    # 2) two lane-dense 128-row blocks ("parallel" axis feeds both v7x cores)
    _run_case(1, 256, 512)
    # 3) ragged batch & seq with NO host-side padding (partial last row block)
    _run_case(2, 20, 200)
    # 4) forced multi-T-block reduction path incl. ragged final block + lane mask
    _run_case(3, 24, 2300, t_block=1024)
    # 5) large DC offset: shifted one-pass moments stay numerically sound
    _run_case(4, 8, 256, offset=1000.0, atol=1e-3, rtol=1e-2)

    print("KERNEL_OK")
</pallas_src>

<mosaic_0001>
module attributes {stable_mosaic.version = 11 : i64} {
  func.func @_ccc_kernel_single(%arg0: i32, %arg1: memref<8x128xf32, #tpu.memory_space<vmem>>, %arg2: memref<8x128xf32, #tpu.memory_space<vmem>>, %arg3: memref<1x1x8xf32, #tpu.memory_space<vmem>>) attributes {dimension_semantics = [#tpu.dimension_semantics<parallel>], iteration_bounds = array<i64: 1>, scalar_prefetch = 0 : i64, scratch_operands = 0 : i64, tpu.core_type = #tpu.core_type<tc>, window_params = [{transform_indices = @transform_0, window_bounds = array<i64: 8, 128>}, {transform_indices = @transform_1, window_bounds = array<i64: 8, 128>}, {transform_indices = @transform_2, window_bounds = array<i64: 1, 1, 8>}]} {
    %c0 = arith.constant 0 : index
    %c0_0 = arith.constant 0 : index
    %0 = vector.load %arg1[%c0, %c0_0] : memref<8x128xf32, #tpu.memory_space<vmem>>, vector<8x128xf32>
    %c0_1 = arith.constant 0 : index
    %c0_2 = arith.constant 0 : index
    %1 = vector.load %arg2[%c0_1, %c0_2] : memref<8x128xf32, #tpu.memory_space<vmem>>, vector<8x128xf32>
    %2 = vector.extract_strided_slice %0 {offsets = [0, 0], sizes = [8, 1], strides = [1, 1]} : vector<8x128xf32> to vector<8x1xf32>
    %3 = vector.extract_strided_slice %1 {offsets = [0, 0], sizes = [8, 1], strides = [1, 1]} : vector<8x128xf32> to vector<8x1xf32>
    %4 = vector.broadcast %2 : vector<8x1xf32> to vector<8x128xf32>
    %5 = arith.subf %0, %4 : vector<8x128xf32>
    %6 = vector.broadcast %3 : vector<8x1xf32> to vector<8x128xf32>
    %7 = arith.subf %1, %6 : vector<8x128xf32>
    %cst = arith.constant dense<0.000000e+00> : vector<8xf32>
    %8 = vector.multi_reduction <add>, %5, %cst [1] : vector<8x128xf32> to vector<8xf32>
    %9 = vector.shape_cast %8 : vector<8xf32> to vector<8x1xf32>
    %cst_3 = arith.constant dense<0.000000e+00> : vector<8xf32>
    %10 = vector.multi_reduction <add>, %7, %cst_3 [1] : vector<8x128xf32> to vector<8xf32>
    %11 = vector.shape_cast %10 : vector<8xf32> to vector<8x1xf32>
    %12 = arith.mulf %5, %5 : vector<8x128xf32>
    %cst_4 = arith.constant dense<0.000000e+00> : vector<8xf32>
    %13 = vector.multi_reduction <add>, %12, %cst_4 [1] : vector<8x128xf32> to vector<8xf32>
    %14 = vector.shape_cast %13 : vector<8xf32> to vector<8x1xf32>
    %15 = arith.mulf %7, %7 : vector<8x128xf32>
    %cst_5 = arith.constant dense<0.000000e+00> : vector<8xf32>
    %16 = vector.multi_reduction <add>, %15, %cst_5 [1] : vector<8x128xf32> to vector<8xf32>
    %17 = vector.shape_cast %16 : vector<8xf32> to vector<8x1xf32>
    %18 = arith.mulf %5, %7 : vector<8x128xf32>
    %cst_6 = arith.constant dense<0.000000e+00> : vector<8xf32>
    %19 = vector.multi_reduction <add>, %18, %cst_6 [1] : vector<8x128xf32> to vector<8xf32>
    %20 = vector.shape_cast %19 : vector<8xf32> to vector<8x1xf32>
    %cst_7 = arith.constant 7.812500e-03 : f32
    %21 = vector.broadcast %cst_7 : f32 to vector<8x1xf32>
    %22 = arith.mulf %9, %21 : vector<8x1xf32>
    %cst_8 = arith.constant 7.812500e-03 : f32
    %23 = vector.broadcast %cst_8 : f32 to vector<8x1xf32>
    %24 = arith.mulf %11, %23 : vector<8x1xf32>
    %25 = arith.mulf %9, %22 : vector<8x1xf32>
    %26 = arith.subf %14, %25 : vector<8x1xf32>
    %cst_9 = arith.constant 0.00787401571 : f32
    %27 = vector.broadcast %cst_9 : f32 to vector<8x1xf32>
    %28 = arith.mulf %26, %27 : vector<8x1xf32>
    %29 = arith.mulf %11, %24 : vector<8x1xf32>
    %30 = arith.subf %17, %29 : vector<8x1xf32>
    %cst_10 = arith.constant 0.00787401571 : f32
    %31 = vector.broadcast %cst_10 : f32 to vector<8x1xf32>
    %32 = arith.mulf %30, %31 : vector<8x1xf32>
    %33 = arith.mulf %9, %24 : vector<8x1xf32>
    %34 = arith.subf %20, %33 : vector<8x1xf32>
    %cst_11 = arith.constant 7.812500e-03 : f32
    %35 = vector.broadcast %cst_11 : f32 to vector<8x1xf32>
    %36 = arith.mulf %34, %35 : vector<8x1xf32>
    %37 = arith.subf %2, %3 : vector<8x1xf32>
    %38 = arith.subf %22, %24 : vector<8x1xf32>
    %39 = arith.addf %37, %38 : vector<8x1xf32>
    %40 = arith.addf %28, %32 : vector<8x1xf32>
    %41 = arith.mulf %39, %39 : vector<8x1xf32>
    %42 = arith.addf %40, %41 : vector<8x1xf32>
    %cst_12 = arith.constant 2.000000e+00 : f32
    %43 = vector.broadcast %cst_12 : f32 to vector<8x1xf32>
    %44 = arith.mulf %43, %36 : vector<8x1xf32>
    %45 = tpu.reciprocal %42 : vector<8x1xf32> -> vector<8x1xf32>
    %46 = arith.mulf %44, %45 : vector<8x1xf32>
    %47 = tpu.transpose %46, [1, 0] : vector<8x1xf32> -> vector<1x8xf32>
    %48 = vector.shape_cast %47 : vector<1x8xf32> to vector<1x1x8xf32>
    %c0_13 = arith.constant 0 : index
    %c0_14 = arith.constant 0 : index
    %c0_15 = arith.constant 0 : index
    %49 = vector.load %arg3[%c0_13, %c0_14, %c0_15] : memref<1x1x8xf32, #tpu.memory_space<vmem>>, vector<1x1x8xf32>
    tpu.vector_store %arg3[%c0_13, %c0_14, %c0_15], %48 {strides = array<i32>} : memref<1x1x8xf32, #tpu.memory_space<vmem>>, vector<1x1x8xf32>,
    return
  }
  func.func @transform_0(%arg0: i32) -> (i32, i32) {
    %c0_i32 = arith.constant 0 : i32
    %c0_i32_0 = arith.constant 0 : i32
    return %arg0, %c0_i32 : i32, i32
  }
  func.func @transform_1(%arg0: i32) -> (i32, i32) {
    %c0_i32 = arith.constant 0 : i32
    %c0_i32_0 = arith.constant 0 : i32
    return %arg0, %c0_i32 : i32, i32
  }
  func.func @transform_2(%arg0: i32) -> (i32, i32, i32) {
    %c0_i32 = arith.constant 0 : i32
    %c0_i32_0 = arith.constant 0 : i32
    %c0_i32_1 = arith.constant 0 : i32
    return %arg0, %c0_i32, %c0_i32_0 : i32, i32, i32
  }
}

</mosaic_0001>

<llo_original>
// kernel: tpu_custom_call.1
$region0: #{tpu_custom_call.1}
  #allocation0 [shape = 'u32[]', space=smem, size = 0x4, offset = 0x4, fixed_abs, tag = 'smem constant byte address 0x4 - core index']
  #allocation1 [shape = 'u32[144,128]{1,0:T(1,128)}', space=vmem, size = 0x12000, scoped, tag = 'internal scratch']
  %s0 = inlined_call_operand.hbm [shape: f32[8,128], index: 0, kind: input, shape index: {}]
  %s1 = inlined_call_operand.hbm [shape: f32[8,128], index: 1, kind: input, shape index: {}]
  %s2 = inlined_call_operand.hbm [shape: f32[1,1,8], index: 2, kind: output, shape index: {}]
  %s3 = sld [smem:[#allocation0]]
  $region26: #{tpu_custom_call.1} parent=0
    _
  %s5 = ssub.s32 1, %s3
  %s6 = scalar_select 0, %s5, %s3
  $region1: #{tpu_custom_call.1} parent=0
    #allocation2 [shape = 'u8[4096]{0}', space=vmem, size = 0x1000, scoped, tag = 'input window, operand 0, single buffered']
    #allocation3 [shape = 's32[1]{0}', space=sflag, size = 0x4, scoped, tag = 'scoped memory for tpu_custom_call.1']
    #allocation4 [shape = 's32[1]{0}', space=sflag, size = 0x4, scoped, tag = 'scoped memory for tpu_custom_call.1']
    #allocation5 [shape = 'u8[4096]{0}', space=vmem, size = 0x1000, scoped, tag = 'input window, operand 1, single buffered']
    #allocation6 [shape = 's32[1]{0}', space=sflag, size = 0x4, scoped, tag = 'scoped memory for tpu_custom_call.1']
    #allocation7 [shape = 'u8[512]{0}', space=vmem, size = 0x400, scoped, tag = 'output window, operand 0, single buffered']
    %7 = vsyncpa [#allocation3], 0
    %8 = vsyncpa [#allocation6], 0
    %9 = vsyncpa [#allocation4], 0
    // Predicated region
    $region2: #{tpu_custom_call.1} parent=1 // pred_check
      _
    $region3: #{tpu_custom_call.1} parent=1 // pred_check_branch
      %11 = sbr.rel (0) target = $region5
    $region4: #{tpu_custom_call.1} parent=1 // pred_region
      %s13 = ssub.s32 128, 128
      %14 = vsyncadd [#allocation3], %s13
      %s16 = sshll.u32 [#allocation2], 4
      %s17 = int_to_ptr.vmem [resolvable:$true] %s16
      %19 = dma.hbm_to_vmem [thread:$0]  %s0, 128, %s17, [#allocation3]
    $region5: #{tpu_custom_call.1} parent=1 // pred_fallthru
      _
    // Predicated region
    $region6: #{tpu_custom_call.1} parent=1 // pred_check
      _
    $region7: #{tpu_custom_call.1} parent=1 // pred_check_branch
      %21 = sbr.rel (0) target = $region9
    $region8: #{tpu_custom_call.1} parent=1 // pred_region
      %s23 = ssub.s32 128, 128
      %24 = vsyncadd [#allocation6], %s23
      %s26 = sshll.u32 [#allocation5], 4
      %s27 = int_to_ptr.vmem [resolvable:$true] %s26
      %29 = dma.hbm_to_vmem [thread:$0]  %s1, 128, %s27, [#allocation6]
    $region9: #{tpu_custom_call.1} parent=1 // pred_fallthru
      _
    // Predicated region
    $region10: #{tpu_custom_call.1} parent=1 // pred_check
      _
    $region11: #{tpu_custom_call.1} parent=1 // pred_check_branch
      %31 = sbr.rel (0) target = $region13
    $region12: #{tpu_custom_call.1} parent=1 // pred_region
      %32 = dma.done [#allocation3], 128
    $region13: #{tpu_custom_call.1} parent=1 // pred_fallthru
      _
    // Predicated region
    $region14: #{tpu_custom_call.1} parent=1 // pred_check
      _
    $region15: #{tpu_custom_call.1} parent=1 // pred_check_branch
      %34 = sbr.rel (0) target = $region17
    $region16: #{tpu_custom_call.1} parent=1 // pred_region
      %35 = dma.done [#allocation6], 128
    $region17: #{tpu_custom_call.1} parent=1 // pred_fallthru
      _
    %v36 = vld [vmem:[#allocation2] sm:$0xff]
    %v37 = vld [vmem:[#allocation5] sm:$0xff]
    %39 = vset.pattern.permute.xlu0 0
    %40 = vperm.xlu0 %39, %v36
    %v41 = vpop.permute.xlu0 %40
    %v43 = vsub.f32 %v36, %v41
    %45 = vset.pattern.permute.xlu0 0
    %46 = vperm.xlu0 %45, %v37
    %v47 = vpop.permute.xlu0 %46
    %v49 = vsub.f32 %v37, %v47
    %50 = vadd.xlane.f32.xlu0 %v43
    %v51 = vpop.xlane.xlu0 %50
    %52 = vadd.xlane.f32.xlu0 %v49
    %v53 = vpop.xlane.xlu0 %52
    %v54 = vmul.f32 %v43, %v43
    %55 = vadd.xlane.f32.xlu0 %v54
    %v56 = vpop.xlane.xlu0 %55
    %v57 = vmul.f32 %v49, %v49
    %58 = vadd.xlane.f32.xlu0 %v57
    %v59 = vpop.xlane.xlu0 %58
    %v60 = vmul.f32 %v43, %v49
    %61 = vadd.xlane.f32.xlu0 %v60
    %v62 = vpop.xlane.xlu0 %61
    %v63 = vmul.f32 %v51, 0.0078125
    %v64 = vmul.f32 %v53, 0.0078125
    %v65 = vmul.f32 %v51, %v63
    %v66 = vsub.f32 %v56, %v65
    %v67 = vmul.f32 %v66, 0.007874016
    %v68 = vmul.f32 %v53, %v64
    %v69 = vsub.f32 %v59, %v68
    %v70 = vmul.f32 %v69, 0.007874016
    %v71 = vmul.f32 %v51, %v64
    %v72 = vsub.f32 %v62, %v71
    %v73 = vmul.f32 %v72, 0.0078125
    %v74 = vsub.f32 %v36, %v37
    %v75 = vsub.f32 %v63, %v64
    %v76 = vadd.f32 %v74, %v75
    %v77 = vadd.f32 %v67, %v70
    %v78 = vmul.f32 %v76, %v76
    %v79 = vadd.f32 %v77, %v78
    %v80 = vmul.f32 %v73, 2.0
    %v81 = vrcp.pop %v79
    %v82 = vmul.f32 %v80, %v81
    %83 = vxpose.xlu0.b32.start [1/16] %v82, 128
    %84 = vxpose.xlu0.b32.cont [2/16] 0.0, 128
    %85 = vxpose.xlu0.b32.cont [3/16] 0.0, 128
    %86 = vxpose.xlu0.b32.cont [4/16] 0.0, 128
    %87 = vxpose.xlu0.b32.cont [5/16] 0.0, 128
    %88 = vxpose.xlu0.b32.cont [6/16] 0.0, 128
    %89 = vxpose.xlu0.b32.cont [7/16] 0.0, 128
    %90 = vxpose.xlu0.b32.cont [8/16] 0.0, 128
    %91 = vxpose.xlu0.b32.cont [9/16] 0.0, 128
    %92 = vxpose.xlu0.b32.cont [10/16] 0.0, 128
    %93 = vxpose.xlu0.b32.cont [11/16] 0.0, 128
    %94 = vxpose.xlu0.b32.cont [12/16] 0.0, 128
    %95 = vxpose.xlu0.b32.cont [13/16] 0.0, 128
    %96 = vxpose.xlu0.b32.cont [14/16] 0.0, 128
    %97 = vxpose.xlu0.b32.cont [15/16] 0.0, 128
    %98 = vxpose.xlu0.b32.end [16/16] 0.0, 128
    %v99 = vpop.trf.xlu0
    %v100 = vpop.trf.xlu0
    %v101 = vpop.trf.xlu0
    %v102 = vpop.trf.xlu0
    %v103 = vpop.trf.xlu0
    %v104 = vpop.trf.xlu0
    %v105 = vpop.trf.xlu0
    %v106 = vpop.trf.xlu0
    %v107 = vpop.trf.xlu0
    %v108 = vpop.trf.xlu0
    %v109 = vpop.trf.xlu0
    %v110 = vpop.trf.xlu0
    %v111 = vpop.trf.xlu0
    %v112 = vpop.trf.xlu0
    %v113 = vpop.trf.xlu0
    %v114 = vpop.trf.xlu0
    %vm115 = vcmask 57344
    %116 = vst.msk [vmem:[#allocation7] sm:$0x1] %vm115, %v99
    // Predicated region
    $region18: #{tpu_custom_call.1} parent=1 // pred_check
      _
    $region19: #{tpu_custom_call.1} parent=1 // pred_check_branch
      %118 = sbr.rel (0) target = $region21
    $region20: #{tpu_custom_call.1} parent=1 // pred_region
      %s120 = ssub.s32 16, 16
      %121 = vsyncadd [#allocation4], %s120
      %s123 = sshll.u32 [#allocation7], 4
      %s124 = int_to_ptr.vmem [resolvable:$true] %s123
      %126 = dma.vmem_to_hbm [thread:$0]  %s124, 16, %s2, [#allocation4]
    $region21: #{tpu_custom_call.1} parent=1 // pred_fallthru
      _
    // Predicated region
    $region22: #{tpu_custom_call.1} parent=1 // pred_check
      _
    $region23: #{tpu_custom_call.1} parent=1 // pred_check_branch
      %128 = sbr.rel (0) target = $region25
    $region24: #{tpu_custom_call.1} parent=1 // pred_region
      %129 = dma.done [#allocation4], 16
    $region25: #{tpu_custom_call.1} parent=1 // pred_fallthru
      _
    %130 = vsyncpa [#allocation3], 1
    %131 = vsyncpa [#allocation6], 1
    %132 = vsyncpa [#allocation4], 1

</llo_original>
